<compile_context>
chip_gen: v7x
topology: tpu7x:2x2x1
jax: 0.10.0
libtpu: 0.0.40
codegen_flags: <defaults>
</compile_context>

<pallas_src>
import functools

import jax
import jax.numpy as jnp
from jax.experimental import pallas as pl
from jax.experimental.pallas import tpu as pltpu

# Lane-padded layer sizes (zero padding keeps results exact).
H1, H1P = 400, 512      # main net layer 1
H2, H2P = 300, 384      # main net layer 2
F1 = 128                # others_net layer 1 (already lane friendly)
F2, F2P = 64, 128       # others_net layer 2
LANE = 128
TM_MAX = 512            # batch tile; safe for v7x's 64 MiB VMEM too


def _round_up(x, m):
    return ((x + m - 1) // m) * m


def _pad2(x, rows, cols):
    out = jnp.zeros((rows, cols), x.dtype)
    return out.at[: x.shape[0], : x.shape[1]].set(x)


# ----------------------------------------------------------------------------
# Kernels
# ----------------------------------------------------------------------------
def _critic_simple_kernel(x_ref, w1_ref, b1_ref, w2_ref, b2_ref,
                          w3_ref, b3_ref, o_ref):
    """other_cars == False path: net(cat([state, action], 1))."""
    x = x_ref[...].astype(jnp.bfloat16)                     # packed [state|action|0pad]
    h1 = jnp.dot(x, w1_ref[...], preferred_element_type=jnp.float32) + b1_ref[...]
    h1 = jnp.maximum(h1, 0.0)
    h2 = jnp.dot(h1.astype(jnp.bfloat16), w2_ref[...],
                 preferred_element_type=jnp.float32) + b2_ref[...]
    h2 = jnp.maximum(h2, 0.0)
    # Final (H2 -> 1) layer as VPU multiply + lane reduction (MXU stays free).
    o_ref[...] = jnp.sum(h2 * w3_ref[...], axis=-1, keepdims=True) + b3_ref[...]


def _critic_others_kernel(others_ref, ea_ref,
                          wo1_ref, bo1_ref, wo2_ref, bo2_ref,
                          wea1_ref, wf1_ref, b1_ref,
                          w2_ref, b2_ref, w3_ref, b3_ref, o_ref):
    """other_cars == True path: net(cat([ego, others_net(others), action], 1))."""
    # others_net: Linear -> ReLU -> Linear -> ReLU
    o_in = others_ref[...].astype(jnp.bfloat16)
    f1 = jnp.dot(o_in, wo1_ref[...], preferred_element_type=jnp.float32) + bo1_ref[...]
    f1 = jnp.maximum(f1, 0.0)
    feats = jnp.dot(f1.astype(jnp.bfloat16), wo2_ref[...],
                    preferred_element_type=jnp.float32) + bo2_ref[...]
    feats = jnp.maximum(feats, 0.0)

    # main net layer 1 with pre-split weights: cat([ego, feats, action]) @ W1
    #   == [ego|action] @ W_ea  +  feats @ W_f
    ea = ea_ref[...].astype(jnp.bfloat16)
    h1 = (jnp.dot(ea, wea1_ref[...], preferred_element_type=jnp.float32)
          + jnp.dot(feats.astype(jnp.bfloat16), wf1_ref[...],
                    preferred_element_type=jnp.float32)
          + b1_ref[...])
    h1 = jnp.maximum(h1, 0.0)
    h2 = jnp.dot(h1.astype(jnp.bfloat16), w2_ref[...],
                 preferred_element_type=jnp.float32) + b2_ref[...]
    h2 = jnp.maximum(h2, 0.0)
    o_ref[...] = jnp.sum(h2 * w3_ref[...], axis=-1, keepdims=True) + b3_ref[...]


# ----------------------------------------------------------------------------
# Parameter init (torch.nn.Linear default init) + one-time packing
# ----------------------------------------------------------------------------
def _linear_params(key, fan_in, fan_out):
    kw, kb = jax.random.split(key)
    bound = 1.0 / jnp.sqrt(jnp.float32(fan_in))
    w = jax.random.uniform(kw, (fan_in, fan_out), jnp.float32, -bound, bound)
    b = jax.random.uniform(kb, (1, fan_out), jnp.float32, -bound, bound)
    return w, b


def init_critic_raw(key, state_dim, action_dim, other_cars=False, ego_dim=None):
    raw = {}
    if other_cars:
        assert ego_dim is not None
        k = jax.random.split(key, 5)
        raw["wo1"], raw["bo1"] = _linear_params(k[0], state_dim - ego_dim, F1)
        raw["wo2"], raw["bo2"] = _linear_params(k[1], F1, F2)
        raw["w1"], raw["b1"] = _linear_params(k[2], ego_dim + F2 + action_dim, H1)
        raw["w2"], raw["b2"] = _linear_params(k[3], H1, H2)
        raw["w3"], raw["b3"] = _linear_params(k[4], H2, 1)
    else:
        k = jax.random.split(key, 3)
        raw["w1"], raw["b1"] = _linear_params(k[0], state_dim + action_dim, H1)
        raw["w2"], raw["b2"] = _linear_params(k[1], H1, H2)
        raw["w3"], raw["b3"] = _linear_params(k[2], H2, 1)
    return raw


def pack_critic_params(raw, state_dim, action_dim, other_cars=False, ego_dim=None):
    """Pre-split, lane-pad and bf16-quantize weights ONCE (outside the jit path)."""
    bf16 = jnp.bfloat16
    p = {}
    if other_cars:
        others_dim = state_dim - ego_dim
        ko = _round_up(others_dim, LANE)
        kea = _round_up(ego_dim + action_dim, LANE)
        p["wo1"] = _pad2(raw["wo1"].astype(bf16), ko, F1)
        p["bo1"] = _pad2(raw["bo1"], 1, F1)
        p["wo2"] = _pad2(raw["wo2"].astype(bf16), F1, F2P)
        p["bo2"] = _pad2(raw["bo2"], 1, F2P)
        # W1 rows reordered/split to match the [ego|action] packing + feats.
        wea = jnp.concatenate([raw["w1"][:ego_dim], raw["w1"][ego_dim + F2:]], axis=0)
        p["wea1"] = _pad2(wea.astype(bf16), kea, H1P)
        p["wf1"] = _pad2(raw["w1"][ego_dim:ego_dim + F2].astype(bf16), F2P, H1P)
    else:
        k1 = _round_up(state_dim + action_dim, LANE)
        p["w1"] = _pad2(raw["w1"].astype(bf16), k1, H1P)
    p["b1"] = _pad2(raw["b1"], 1, H1P)
    p["w2"] = _pad2(raw["w2"].astype(bf16), H1P, H2P)
    p["b2"] = _pad2(raw["b2"], 1, H2P)
    p["w3_row"] = _pad2(raw["w3"].T, 1, H2P)    # f32, used on VPU/XLU
    p["b3"] = raw["b3"]                         # (1, 1) f32
    return p


# ----------------------------------------------------------------------------
# Forward wrapper
# ----------------------------------------------------------------------------
@functools.partial(jax.jit, static_argnames=("other_cars", "ego_dim"))
def critic_forward(params, state, action, *, other_cars=False, ego_dim=None):
    B = state.shape[0]
    bp = _round_up(max(B, 1), 8)
    tm = min(TM_MAX, bp)
    bp = _round_up(bp, tm)
    grid = (bp // tm,)

    def act_spec(k):
        return pl.BlockSpec((tm, k), lambda i: (i, 0))

    def w_spec(a):                       # weights stay VMEM-resident across grid
        return pl.BlockSpec(a.shape, lambda i: (0, 0))

    out_spec = pl.BlockSpec((tm, 1), lambda i: (i, 0))
    out_shape = jax.ShapeDtypeStruct((bp, 1), jnp.float32)

    if not other_cars:
        x = jnp.concatenate([state, action], axis=1)
        kp = _round_up(x.shape[1], LANE)
        x = jnp.pad(x, ((0, bp - B), (0, kp - x.shape[1])))
        args = (x, params["w1"], params["b1"], params["w2"], params["b2"],
                params["w3_row"], params["b3"])
        in_specs = [act_spec(kp)] + [w_spec(a) for a in args[1:]]
        flops = 2 * bp * (kp * H1P + H1P * H2P + H2P)
        kernel = _critic_simple_kernel
    else:
        others = state[:, ego_dim:]
        ko = _round_up(others.shape[1], LANE)
        others = jnp.pad(others, ((0, bp - B), (0, ko - others.shape[1])))
        ea = jnp.concatenate([state[:, :ego_dim], action], axis=1)
        kea = _round_up(ea.shape[1], LANE)
        ea = jnp.pad(ea, ((0, bp - B), (0, kea - ea.shape[1])))
        args = (others, ea,
                params["wo1"], params["bo1"], params["wo2"], params["bo2"],
                params["wea1"], params["wf1"], params["b1"],
                params["w2"], params["b2"], params["w3_row"], params["b3"])
        in_specs = [act_spec(ko), act_spec(kea)] + [w_spec(a) for a in args[2:]]
        flops = 2 * bp * (ko * F1 + F1 * F2P + kea * H1P + F2P * H1P
                          + H1P * H2P + H2P)
        kernel = _critic_others_kernel

    bytes_accessed = int(sum(a.size * a.dtype.itemsize for a in args) + bp * 4)
    out = pl.pallas_call(
        kernel,
        out_shape=out_shape,
        grid=grid,
        in_specs=in_specs,
        out_specs=out_spec,
        compiler_params=pltpu.CompilerParams(
            dimension_semantics=("parallel",)),
        cost_estimate=pl.CostEstimate(flops=flops, transcendentals=0,
                                      bytes_accessed=bytes_accessed),
    )(*args)
    return out[:B]


# ----------------------------------------------------------------------------
# References (pure JAX, no Pallas)
# ----------------------------------------------------------------------------
def critic_forward_ref_f32(raw, state, action, *, other_cars=False, ego_dim=None):
    relu = lambda x: jnp.maximum(x, 0.0)
    if other_cars:
        ego, others = state[:, :ego_dim], state[:, ego_dim:]
        f = relu(others @ raw["wo1"] + raw["bo1"])
        f = relu(f @ raw["wo2"] + raw["bo2"])
        x = jnp.concatenate([ego, f, action], axis=1)
    else:
        x = jnp.concatenate([state, action], axis=1)
    h = relu(x @ raw["w1"] + raw["b1"])
    h = relu(h @ raw["w2"] + raw["b2"])
    return h @ raw["w3"] + raw["b3"]


def critic_forward_ref_bf16(raw, state, action, *, other_cars=False, ego_dim=None):
    """Mirrors the kernel's bf16 weight/operand quantization (f32 accumulate)."""
    relu = lambda x: jnp.maximum(x, 0.0)
    bf = lambda x: x.astype(jnp.bfloat16)
    dot = lambda a, w: jnp.dot(bf(a), bf(w), preferred_element_type=jnp.float32)
    if other_cars:
        ego, others = state[:, :ego_dim], state[:, ego_dim:]
        f = relu(dot(others, raw["wo1"]) + raw["bo1"])
        f = relu(dot(f, raw["wo2"]) + raw["bo2"])
        x = jnp.concatenate([ego, f, action], axis=1)
    else:
        x = jnp.concatenate([state, action], axis=1)
    h = relu(dot(x, raw["w1"]) + raw["b1"])
    h = relu(dot(h, raw["w2"]) + raw["b2"])
    return jnp.sum(h * raw["w3"].T, axis=-1, keepdims=True) + raw["b3"]


# ----------------------------------------------------------------------------
# Demo
# ----------------------------------------------------------------------------
if __name__ == "__main__":
    key = jax.random.PRNGKey(0)
    B, STATE_DIM, ACTION_DIM, EGO_DIM = 4, 20, 4, 8

    k_state, k_action, k_p1, k_p2 = jax.random.split(key, 4)
    state = jax.random.normal(k_state, (B, STATE_DIM), jnp.float32)
    action = jax.random.normal(k_action, (B, ACTION_DIM), jnp.float32)

    # --- other_cars = False ---
    raw_s = init_critic_raw(k_p1, STATE_DIM, ACTION_DIM, other_cars=False)
    params_s = pack_critic_params(raw_s, STATE_DIM, ACTION_DIM, other_cars=False)
    out_s = critic_forward(params_s, state, action, other_cars=False)
    jax.block_until_ready(out_s)
    mirror_s = critic_forward_ref_bf16(raw_s, state, action, other_cars=False)
    ref_s = critic_forward_ref_f32(raw_s, state, action, other_cars=False)
    assert out_s.shape == (B, 1)
    assert jnp.allclose(out_s, mirror_s, atol=2e-3, rtol=2e-3), (
        f"simple mismatch: {float(jnp.max(jnp.abs(out_s - mirror_s)))}")
    assert jnp.allclose(out_s, ref_s, atol=1e-1, rtol=1e-1)

    # --- other_cars = True ---
    raw_o = init_critic_raw(k_p2, STATE_DIM, ACTION_DIM,
                            other_cars=True, ego_dim=EGO_DIM)
    params_o = pack_critic_params(raw_o, STATE_DIM, ACTION_DIM,
                                  other_cars=True, ego_dim=EGO_DIM)
    out_o = critic_forward(params_o, state, action,
                           other_cars=True, ego_dim=EGO_DIM)
    jax.block_until_ready(out_o)
    mirror_o = critic_forward_ref_bf16(raw_o, state, action,
                                       other_cars=True, ego_dim=EGO_DIM)
    ref_o = critic_forward_ref_f32(raw_o, state, action,
                                   other_cars=True, ego_dim=EGO_DIM)
    assert out_o.shape == (B, 1)
    assert jnp.allclose(out_o, mirror_o, atol=2e-3, rtol=2e-3), (
        f"others mismatch: {float(jnp.max(jnp.abs(out_o - mirror_o)))}")
    assert jnp.allclose(out_o, ref_o, atol=1e-1, rtol=1e-1)

    print("KERNEL_OK")
</pallas_src>

<mosaic_0001>
module attributes {stable_mosaic.version = 11 : i64} {
  func.func @_critic_simple_kernel(%arg0: i32, %arg1: memref<8x128xf32, #tpu.memory_space<vmem>>, %arg2: memref<128x512xbf16, #tpu.memory_space<vmem>>, %arg3: memref<1x512xf32, #tpu.memory_space<vmem>>, %arg4: memref<512x384xbf16, #tpu.memory_space<vmem>>, %arg5: memref<1x384xf32, #tpu.memory_space<vmem>>, %arg6: memref<1x384xf32, #tpu.memory_space<vmem>>, %arg7: memref<1x1xf32, #tpu.memory_space<vmem>>, %arg8: memref<8x1xf32, #tpu.memory_space<vmem>>) attributes {dimension_semantics = [#tpu.dimension_semantics<parallel>], iteration_bounds = array<i64: 1>, scalar_prefetch = 0 : i64, scratch_operands = 0 : i64, tpu.core_type = #tpu.core_type<tc>, window_params = [{transform_indices = @transform_0, window_bounds = array<i64: 8, 128>}, {pipeline_mode = #tpu.pipeline_mode<synchronous>, transform_indices = @transform_1, window_bounds = array<i64: 128, 512>}, {pipeline_mode = #tpu.pipeline_mode<synchronous>, transform_indices = @transform_2, window_bounds = array<i64: 1, 512>}, {pipeline_mode = #tpu.pipeline_mode<synchronous>, transform_indices = @transform_3, window_bounds = array<i64: 512, 384>}, {pipeline_mode = #tpu.pipeline_mode<synchronous>, transform_indices = @transform_4, window_bounds = array<i64: 1, 384>}, {pipeline_mode = #tpu.pipeline_mode<synchronous>, transform_indices = @transform_5, window_bounds = array<i64: 1, 384>}, {pipeline_mode = #tpu.pipeline_mode<synchronous>, transform_indices = @transform_6, window_bounds = array<i64: 1, 1>}, {transform_indices = @transform_7, window_bounds = array<i64: 8, 1>}]} {
    %c0 = arith.constant 0 : index
    %c0_0 = arith.constant 0 : index
    %0 = vector.load %arg1[%c0, %c0_0] : memref<8x128xf32, #tpu.memory_space<vmem>>, vector<8x128xf32>
    %1 = arith.truncf %0 : vector<8x128xf32> to vector<8x128xbf16>
    %c0_1 = arith.constant 0 : index
    %c0_2 = arith.constant 0 : index
    %2 = vector.load %arg2[%c0_1, %c0_2] : memref<128x512xbf16, #tpu.memory_space<vmem>>, vector<128x512xbf16>
    %cst = arith.constant dense<0.000000e+00> : vector<8x512xf32>
    %3 = tpu.matmul %1, %2, %cst {dimension_numbers = #tpu.dot_dimension_numbers<[1], [0], [0], [1], [0, 0, 1, 1], [], []>} : vector<8x128xbf16>, vector<128x512xbf16>, vector<8x512xf32> -> vector<8x512xf32>
    %c0_3 = arith.constant 0 : index
    %c0_4 = arith.constant 0 : index
    %4 = vector.load %arg3[%c0_3, %c0_4] : memref<1x512xf32, #tpu.memory_space<vmem>>, vector<1x512xf32>
    %5 = vector.broadcast %4 : vector<1x512xf32> to vector<8x512xf32>
    %6 = arith.addf %3, %5 : vector<8x512xf32>
    %cst_5 = arith.constant 0.000000e+00 : f32
    %7 = vector.broadcast %cst_5 : f32 to vector<8x512xf32>
    %8 = arith.maximumf %6, %7 : vector<8x512xf32>
    %9 = arith.truncf %8 : vector<8x512xf32> to vector<8x512xbf16>
    %c0_6 = arith.constant 0 : index
    %c0_7 = arith.constant 0 : index
    %10 = vector.load %arg4[%c0_6, %c0_7] : memref<512x384xbf16, #tpu.memory_space<vmem>>, vector<512x384xbf16>
    %cst_8 = arith.constant dense<0.000000e+00> : vector<8x384xf32>
    %11 = tpu.matmul %9, %10, %cst_8 {dimension_numbers = #tpu.dot_dimension_numbers<[1], [0], [0], [1], [0, 0, 1, 1], [], []>} : vector<8x512xbf16>, vector<512x384xbf16>, vector<8x384xf32> -> vector<8x384xf32>
    %c0_9 = arith.constant 0 : index
    %c0_10 = arith.constant 0 : index
    %12 = vector.load %arg5[%c0_9, %c0_10] : memref<1x384xf32, #tpu.memory_space<vmem>>, vector<1x384xf32>
    %13 = vector.broadcast %12 : vector<1x384xf32> to vector<8x384xf32>
    %14 = arith.addf %11, %13 : vector<8x384xf32>
    %cst_11 = arith.constant 0.000000e+00 : f32
    %15 = vector.broadcast %cst_11 : f32 to vector<8x384xf32>
    %16 = arith.maximumf %14, %15 : vector<8x384xf32>
    %c0_12 = arith.constant 0 : index
    %c0_13 = arith.constant 0 : index
    %17 = vector.load %arg6[%c0_12, %c0_13] : memref<1x384xf32, #tpu.memory_space<vmem>>, vector<1x384xf32>
    %18 = vector.broadcast %17 : vector<1x384xf32> to vector<8x384xf32>
    %19 = arith.mulf %16, %18 : vector<8x384xf32>
    %cst_14 = arith.constant dense<0.000000e+00> : vector<8xf32>
    %20 = vector.multi_reduction <add>, %19, %cst_14 [1] : vector<8x384xf32> to vector<8xf32>
    %21 = vector.shape_cast %20 : vector<8xf32> to vector<8x1xf32>
    %c0_15 = arith.constant 0 : index
    %c0_16 = arith.constant 0 : index
    %22 = vector.load %arg7[%c0_15, %c0_16] : memref<1x1xf32, #tpu.memory_space<vmem>>, vector<1x1xf32>
    %23 = vector.broadcast %22 : vector<1x1xf32> to vector<8x1xf32>
    %24 = arith.addf %21, %23 : vector<8x1xf32>
    %c0_17 = arith.constant 0 : index
    %c0_18 = arith.constant 0 : index
    %25 = vector.load %arg8[%c0_17, %c0_18] : memref<8x1xf32, #tpu.memory_space<vmem>>, vector<8x1xf32>
    tpu.vector_store %arg8[%c0_17, %c0_18], %24 {strides = array<i32>} : memref<8x1xf32, #tpu.memory_space<vmem>>, vector<8x1xf32>,
    return
  }
  func.func @transform_0(%arg0: i32) -> (i32, i32) {
    %c0_i32 = arith.constant 0 : i32
    %c0_i32_0 = arith.constant 0 : i32
    return %arg0, %c0_i32 : i32, i32
  }
  func.func @transform_1(%arg0: i32) -> (i32, i32) {
    %c0_i32 = arith.constant 0 : i32
    %c0_i32_0 = arith.constant 0 : i32
    %c0_i32_1 = arith.constant 0 : i32
    return %c0_i32, %c0_i32_0 : i32, i32
  }
  func.func @transform_2(%arg0: i32) -> (i32, i32) {
    %c0_i32 = arith.constant 0 : i32
    %c0_i32_0 = arith.constant 0 : i32
    %c0_i32_1 = arith.constant 0 : i32
    return %c0_i32, %c0_i32_0 : i32, i32
  }
  func.func @transform_3(%arg0: i32) -> (i32, i32) {
    %c0_i32 = arith.constant 0 : i32
    %c0_i32_0 = arith.constant 0 : i32
    %c0_i32_1 = arith.constant 0 : i32
    return %c0_i32, %c0_i32_0 : i32, i32
  }
  func.func @transform_4(%arg0: i32) -> (i32, i32) {
    %c0_i32 = arith.constant 0 : i32
    %c0_i32_0 = arith.constant 0 : i32
    %c0_i32_1 = arith.constant 0 : i32
    return %c0_i32, %c0_i32_0 : i32, i32
  }
  func.func @transform_5(%arg0: i32) -> (i32, i32) {
    %c0_i32 = arith.constant 0 : i32
    %c0_i32_0 = arith.constant 0 : i32
    %c0_i32_1 = arith.constant 0 : i32
    return %c0_i32, %c0_i32_0 : i32, i32
  }
  func.func @transform_6(%arg0: i32) -> (i32, i32) {
    %c0_i32 = arith.constant 0 : i32
    %c0_i32_0 = arith.constant 0 : i32
    %c0_i32_1 = arith.constant 0 : i32
    return %c0_i32, %c0_i32_0 : i32, i32
  }
  func.func @transform_7(%arg0: i32) -> (i32, i32) {
    %c0_i32 = arith.constant 0 : i32
    %c0_i32_0 = arith.constant 0 : i32
    return %arg0, %c0_i32 : i32, i32
  }
}

</mosaic_0001>

<llo_original>
// kernel: critic_forward.1
$region0: #{critic_forward.1}
  #allocation0 [shape = 'u32[]', space=smem, size = 0x4, offset = 0x4, fixed_abs, tag = 'smem constant byte address 0x4 - core index']
  #allocation1 [shape = 'u32[144,128]{1,0:T(1,128)}', space=vmem, size = 0x12000, scoped, tag = 'internal scratch']
  #allocation2 [shape = 'f32[1,1]{1,0:T(1,128)S(1)}', space=vmem, size = 0x200, scoped, tag = 'scoped memory for critic_forward.1']
  %s0 = inlined_call_operand.vmem [shape: f32[8,128], index: 0, kind: input, shape index: {}]
  %s1 = inlined_call_operand.hbm [shape: bf16[128,512], index: 1, kind: input, shape index: {}]
  %s2 = inlined_call_operand.vmem [shape: f32[1,512], index: 2, kind: input, shape index: {}]
  %s3 = inlined_call_operand.hbm [shape: bf16[512,384], index: 3, kind: input, shape index: {}]
  %s4 = inlined_call_operand.vmem [shape: f32[1,384], index: 4, kind: input, shape index: {}]
  %s5 = inlined_call_operand.vmem [shape: f32[1,384], index: 5, kind: input, shape index: {}]
  %s6 = inlined_call_operand.<no memory space> [shape: f32[1,1], index: 6, kind: input, shape index: {}]
  %s7 = inlined_call_operand.vmem [shape: f32[8,1], index: 7, kind: output, shape index: {}]
  %s8 = sld [smem:[#allocation0]]
  $region46: #{critic_forward.1} parent=0
    _
  %s10 = ssub.s32 1, %s8
  %s11 = scalar_select 0, %s10, %s8
  %v12 = vstv %s6
  %13 = vst [vmem:[#allocation2] sm:$0x1] %v12
  $region1: #{critic_forward.1} parent=0
    #allocation3 [shape = 'u8[131072]{0}', space=vmem, size = 0x20000, scoped, tag = 'input window, operand 1, single buffered']
    #allocation4 [shape = 's32[1]{0}', space=sflag, size = 0x4, scoped, tag = 'scoped memory for critic_forward.1']
    #allocation5 [shape = 'u8[393216]{0}', space=vmem, size = 0x60000, scoped, tag = 'input window, operand 3, single buffered']
    #allocation6 [shape = 's32[1]{0}', space=sflag, size = 0x4, scoped, tag = 'scoped memory for critic_forward.1']
    %14 = vsyncpa [#allocation4], 0
    %15 = vsyncpa [#allocation6], 0
    // Predicated region
    $region2: #{critic_forward.1} parent=1 // pred_check
      _
    $region3: #{critic_forward.1} parent=1 // pred_check_branch
      %17 = sbr.rel (0) target = $region5
    $region4: #{critic_forward.1} parent=1 // pred_region
      _
    $region5: #{critic_forward.1} parent=1 // pred_fallthru
      _
    // Predicated region
    $region6: #{critic_forward.1} parent=1 // pred_check
      _
    $region7: #{critic_forward.1} parent=1 // pred_check_branch
      %19 = sbr.rel (0) target = $region9
    $region8: #{critic_forward.1} parent=1 // pred_region
      %s21 = ssub.s32 4096, 4096
      %22 = vsyncadd [#allocation4], %s21
      %s23 = sshll.u32 [#allocation3], 4
      %s24 = int_to_ptr.vmem [resolvable:$true] %s23
      %29 = dma.hbm_to_vmem [thread:$0]  %s1, 4096, %s24, [#allocation4], 256, 256, 16
    $region9: #{critic_forward.1} parent=1 // pred_fallthru
      _
    // Predicated region
    $region10: #{critic_forward.1} parent=1 // pred_check
      _
    $region11: #{critic_forward.1} parent=1 // pred_check_branch
      %31 = sbr.rel (0) target = $region13
    $region12: #{critic_forward.1} parent=1 // pred_region
      _
    $region13: #{critic_forward.1} parent=1 // pred_fallthru
      _
    // Predicated region
    $region14: #{critic_forward.1} parent=1 // pred_check
      _
    $region15: #{critic_forward.1} parent=1 // pred_check_branch
      %33 = sbr.rel (0) target = $region17
    $region16: #{critic_forward.1} parent=1 // pred_region
      %s35 = ssub.s32 12288, 12288
      %36 = vsyncadd [#allocation6], %s35
      %s37 = sshll.u32 [#allocation5], 4
      %s38 = int_to_ptr.vmem [resolvable:$true] %s37
      %43 = dma.hbm_to_vmem [thread:$0]  %s3, 12288, %s38, [#allocation6], 192, 192, 12
    $region17: #{critic_forward.1} parent=1 // pred_fallthru
      _
    // Predicated region
    $region18: #{critic_forward.1} parent=1 // pred_check
      _
    $region19: #{critic_forward.1} parent=1 // pred_check_branch
      %45 = sbr.rel (0) target = $region21
    $region20: #{critic_forward.1} parent=1 // pred_region
      _
    $region21: #{critic_forward.1} parent=1 // pred_fallthru
      _
    // Predicated region
    $region22: #{critic_forward.1} parent=1 // pred_check
      _
    $region23: #{critic_forward.1} parent=1 // pred_check_branch
      %47 = sbr.rel (0) target = $region25
    $region24: #{critic_forward.1} parent=1 // pred_region
      _
    $region25: #{critic_forward.1} parent=1 // pred_fallthru
      _
    // Predicated region
    $region26: #{critic_forward.1} parent=1 // pred_check
      _
    $region27: #{critic_forward.1} parent=1 // pred_check_branch
      %49 = sbr.rel (0) target = $region29
    $region28: #{critic_forward.1} parent=1 // pred_region
      _
    $region29: #{critic_forward.1} parent=1 // pred_fallthru
      _
    // Predicated region
    $region30: #{critic_forward.1} parent=1 // pred_check
      _
    $region31: #{critic_forward.1} parent=1 // pred_check_branch
      %51 = sbr.rel (0) target = $region33
    $region32: #{critic_forward.1} parent=1 // pred_region
      %52 = dma.done [#allocation4], 4096
    $region33: #{critic_forward.1} parent=1 // pred_fallthru
      _
    // Predicated region
    $region34: #{critic_forward.1} parent=1 // pred_check
      _
    $region35: #{critic_forward.1} parent=1 // pred_check_branch
      %54 = sbr.rel (0) target = $region37
    $region36: #{critic_forward.1} parent=1 // pred_region
      %55 = dma.done [#allocation6], 12288
    $region37: #{critic_forward.1} parent=1 // pred_fallthru
      _
    %v57 = vld [vmem:[%s0] sm:$0xff]
    %v58 = vpack.c.bf16 %v57, %v57
    %v59 = vld [vmem:[#allocation3] sm:$0xff]
    %v60 = vld [vmem:[#allocation3 + $0x8] sm:$0xff]
    %v61 = vld [vmem:[#allocation3 + $0x10] sm:$0xff]
    %v62 = vld [vmem:[#allocation3 + $0x18] sm:$0xff]
    %v63 = vld [vmem:[#allocation3 + $0x20] sm:$0xff]
    %v64 = vld [vmem:[#allocation3 + $0x28] sm:$0xff]
    %v65 = vld [vmem:[#allocation3 + $0x30] sm:$0xff]
    %v66 = vld [vmem:[#allocation3 + $0x38] sm:$0xff]
    %v67 = vld [vmem:[#allocation3 + $0x40] sm:$0xff]
    %v68 = vld [vmem:[#allocation3 + $0x48] sm:$0xff]
    %v69 = vld [vmem:[#allocation3 + $0x50] sm:$0xff]
    %v70 = vld [vmem:[#allocation3 + $0x58] sm:$0xff]
    %v71 = vld [vmem:[#allocation3 + $0x60] sm:$0xff]
    %v72 = vld [vmem:[#allocation3 + $0x68] sm:$0xff]
    %v73 = vld [vmem:[#allocation3 + $0x70] sm:$0xff]
    %v74 = vld [vmem:[#allocation3 + $0x78] sm:$0xff]
    %v75 = vld [vmem:[#allocation3 + $0x80] sm:$0xff]
    %v76 = vld [vmem:[#allocation3 + $0x88] sm:$0xff]
    %v77 = vld [vmem:[#allocation3 + $0x90] sm:$0xff]
    %v78 = vld [vmem:[#allocation3 + $0x98] sm:$0xff]
    %v79 = vld [vmem:[#allocation3 + $0xa0] sm:$0xff]
    %v80 = vld [vmem:[#allocation3 + $0xa8] sm:$0xff]
    %v81 = vld [vmem:[#allocation3 + $0xb0] sm:$0xff]
    %v82 = vld [vmem:[#allocation3 + $0xb8] sm:$0xff]
    %v83 = vld [vmem:[#allocation3 + $0xc0] sm:$0xff]
    %v84 = vld [vmem:[#allocation3 + $0xc8] sm:$0xff]
    %v85 = vld [vmem:[#allocation3 + $0xd0] sm:$0xff]
    %v86 = vld [vmem:[#allocation3 + $0xd8] sm:$0xff]
    %v87 = vld [vmem:[#allocation3 + $0xe0] sm:$0xff]
    %v88 = vld [vmem:[#allocation3 + $0xe8] sm:$0xff]
    %v89 = vld [vmem:[#allocation3 + $0xf0] sm:$0xff]
    %v90 = vld [vmem:[#allocation3 + $0xf8] sm:$0xff]
    %v91 = vld [vmem:[%s2] sm:$0xf]
    %v93 = vlaneseq
    %v94 = vshrl.u32 %v93, 7
    %v95 = vsub.s32 0, %v94
    %v96 = vrot.slane %v91, %v95
    %v97 = vlaneseq
    %v98 = vshrl.u32 %v97, 7
    %v99 = vsub.s32 1, %v98
    %v100 = vrot.slane %v91, %v99
    %v101 = vlaneseq
    %v102 = vshrl.u32 %v101, 7
    %v103 = vsub.s32 2, %v102
    %v104 = vrot.slane %v91, %v103
    %v105 = vlaneseq
    %v106 = vshrl.u32 %v105, 7
    %v107 = vsub.s32 3, %v106
    %v108 = vrot.slane %v91, %v107
    %v145 = vunpack.c.l.b16 %v59
    %v146 = vunpack.c.h.b16 %v59
    %v147 = vunpack.c.l.b16 %v60
    %v148 = vunpack.c.h.b16 %v60
    %v149 = vunpack.c.l.b16 %v61
    %v150 = vunpack.c.h.b16 %v61
    %v151 = vunpack.c.l.b16 %v62
    %v152 = vunpack.c.h.b16 %v62
    %v153 = vunpack.c.l.b16 %v63
    %v154 = vunpack.c.h.b16 %v63
    %v155 = vunpack.c.l.b16 %v64
    %v156 = vunpack.c.h.b16 %v64
    %v157 = vunpack.c.l.b16 %v65
    %v158 = vunpack.c.h.b16 %v65
    %v159 = vunpack.c.l.b16 %v66
    %v160 = vunpack.c.h.b16 %v66
    %v161 = vunpack.c.l.b16 %v67
    %v162 = vunpack.c.h.b16 %v67
    %v163 = vunpack.c.l.b16 %v68
    %v164 = vunpack.c.h.b16 %v68
    %v165 = vunpack.c.l.b16 %v69
    %v166 = vunpack.c.h.b16 %v69
    %v167 = vunpack.c.l.b16 %v70
    %v168 = vunpack.c.h.b16 %v70
    %v169 = vunpack.c.l.b16 %v71
    %v170 = vunpack.c.h.b16 %v71
    %v171 = vunpack.c.l.b16 %v72
    %v172 = vunpack.c.h.b16 %v72
    %v173 = vunpack.c.l.b16 %v73
    %v174 = vunpack.c.h.b16 %v73
    %v175 = vunpack.c.l.b16 %v74
    %v176 = vunpack.c.h.b16 %v74
    %v177 = vunpack.c.l.b16 %v75
    %v178 = vunpack.c.h.b16 %v75
    %v179 = vunpack.c.l.b16 %v76
    %v180 = vunpack.c.h.b16 %v76
    %v181 = vunpack.c.l.b16 %v77
    %v182 = vunpack.c.h.b16 %v77
    %v183 = vunpack.c.l.b16 %v78
    %v184 = vunpack.c.h.b16 %v78
    %v185 = vunpack.c.l.b16 %v79
    %v186 = vunpack.c.h.b16 %v79
    %v187 = vunpack.c.l.b16 %v80
    %v188 = vunpack.c.h.b16 %v80
    %v189 = vunpack.c.l.b16 %v81
    %v190 = vunpack.c.h.b16 %v81
    %v191 = vunpack.c.l.b16 %v82
    %v192 = vunpack.c.h.b16 %v82
    %v193 = vunpack.c.l.b16 %v83
    %v194 = vunpack.c.h.b16 %v83
    %v195 = vunpack.c.l.b16 %v84
    %v196 = vunpack.c.h.b16 %v84
    %v197 = vunpack.c.l.b16 %v85
    %v198 = vunpack.c.h.b16 %v85
    %v199 = vunpack.c.l.b16 %v86
    %v200 = vunpack.c.h.b16 %v86
    %v201 = vunpack.c.l.b16 %v87
    %v202 = vunpack.c.h.b16 %v87
    %v203 = vunpack.c.l.b16 %v88
    %v204 = vunpack.c.h.b16 %v88
    %v205 = vunpack.c.l.b16 %v89
    %v206 = vunpack.c.h.b16 %v89
    %v207 = vunpack.c.l.b16 %v90
    %v208 = vunpack.c.h.b16 %v90
    %v209 = vpack.c.b16 %v149, %v145
    %v210 = vpack.c.b16 %v150, %v146
    %v211 = vpack.c.b16 %v151, %v147
    %v212 = vpack.c.b16 %v152, %v148
    %v213 = vpack.c.b16 %v157, %v153
    %v214 = vpack.c.b16 %v158, %v154
    %v215 = vpack.c.b16 %v159, %v155
    %v216 = vpack.c.b16 %v160, %v156
    %v217 = vpack.c.b16 %v165, %v161
    %v218 = vpack.c.b16 %v166, %v162
    %v219 = vpack.c.b16 %v167, %v163
    %v220 = vpack.c.b16 %v168, %v164
    %v221 = vpack.c.b16 %v173, %v169
    %v222 = vpack.c.b16 %v174, %v170
    %v223 = vpack.c.b16 %v175, %v171
    %v224 = vpack.c.b16 %v176, %v172
    %v225 = vpack.c.b16 %v181, %v177
    %v226 = vpack.c.b16 %v182, %v178
    %v227 = vpack.c.b16 %v183, %v179
    %v228 = vpack.c.b16 %v184, %v180
    %v229 = vpack.c.b16 %v189, %v185
    %v230 = vpack.c.b16 %v190, %v186
    %v231 = vpack.c.b16 %v191, %v187
    %v232 = vpack.c.b16 %v192, %v188
    %v233 = vpack.c.b16 %v197, %v193
    %v234 = vpack.c.b16 %v198, %v194
    %v235 = vpack.c.b16 %v199, %v195
    %v236 = vpack.c.b16 %v200, %v196
    %v237 = vpack.c.b16 %v205, %v201
    %v238 = vpack.c.b16 %v206, %v202
    %v239 = vpack.c.b16 %v207, %v203
    %v240 = vpack.c.b16 %v208, %v204
    %273 = vmatprep.subr.bf16.mxu0 %v210
    %274 = vmatpush1.bf16.msra.mxu0 %v209
    %275 = vmatprep.subr.bf16.mxu0 %v214
    %276 = vmatpush1.bf16.msra.mxu0 %v213
    %277 = vmatprep.subr.bf16.mxu0 %v218
    %278 = vmatpush1.bf16.msra.mxu0 %v217
    %279 = vmatprep.subr.bf16.mxu0 %v222
    %280 = vmatpush1.bf16.msra.mxu0 %v221
    %281 = vmatprep.subr.bf16.mxu0 %v226
    %282 = vmatpush1.bf16.msra.mxu0 %v225
    %283 = vmatprep.subr.bf16.mxu0 %v230
    %284 = vmatpush1.bf16.msra.mxu0 %v229
    %285 = vmatprep.subr.bf16.mxu0 %v234
    %286 = vmatpush1.bf16.msra.mxu0 %v233
    %287 = vmatprep.subr.bf16.mxu0 %v238
    %288 = vmatpush1.bf16.msra.mxu0 %v237
    %289 = vmatprep.subr.bf16.mxu0 0
    %290 = vmatpush1.bf16.msra.mxu0 0
    %291 = vmatprep.subr.bf16.mxu0 0
    %292 = vmatpush1.bf16.msra.mxu0 0
    %293 = vmatprep.subr.bf16.mxu0 0
    %294 = vmatpush1.bf16.msra.mxu0 0
    %295 = vmatprep.subr.bf16.mxu0 0
    %296 = vmatpush1.bf16.msra.mxu0 0
    %297 = vmatprep.subr.bf16.mxu0 0
    %298 = vmatpush1.bf16.msra.mxu0 0
    %299 = vmatprep.subr.bf16.mxu0 0
    %300 = vmatpush1.bf16.msra.mxu0 0
    %301 = vmatprep.subr.bf16.mxu0 0
    %302 = vmatpush1.bf16.msra.mxu0 0
    %303 = vmatprep.subr.bf16.mxu0 0
    %304 = vmatpush1.bf16.msra.mxu0 0
    %305 = vmatprep.mubr.bf16.mxu0 0
    %306 = vmatmul.mubr.bf16.gmra.mrb[0].mxu0 %v58
    %v307 = vpop.f32.mrb[0].mxu0
    %v308 = vadd.f32 %v96, %v307
    %v309 = vpop.f32.mrb[0].mxu0
    %v310 = vadd.f32 %v100, %v309
    %v311 = vpop.f32.mrb[0].mxu0
    %v312 = vpop.f32.mrb[0].mxu0
    %313 = vdwg.mxu0
    %314 = vmatprep.subr.bf16.mxu0 %v212
    %315 = vmatpush1.bf16.msra.mxu0 %v211
    %316 = vmatprep.subr.bf16.mxu0 %v216
    %317 = vmatpush1.bf16.msra.mxu0 %v215
    %318 = vmatprep.subr.bf16.mxu0 %v220
    %319 = vmatpush1.bf16.msra.mxu0 %v219
    %320 = vmatprep.subr.bf16.mxu0 %v224
    %321 = vmatpush1.bf16.msra.mxu0 %v223
    %322 = vmatprep.subr.bf16.mxu0 %v228
    %323 = vmatpush1.bf16.msra.mxu0 %v227
    %324 = vmatprep.subr.bf16.mxu0 %v232
    %325 = vmatpush1.bf16.msra.mxu0 %v231
    %326 = vmatprep.subr.bf16.mxu0 %v236
    %327 = vmatpush1.bf16.msra.mxu0 %v235
    %328 = vmatprep.subr.bf16.mxu0 %v240
    %329 = vmatpush1.bf16.msra.mxu0 %v239
    %330 = vmatprep.subr.bf16.mxu0 0
    %331 = vmatpush1.bf16.msra.mxu0 0
    %332 = vmatprep.subr.bf16.mxu0 0
    %333 = vmatpush1.bf16.msra.mxu0 0
    %334 = vmatprep.subr.bf16.mxu0 0
    %335 = vmatpush1.bf16.msra.mxu0 0
    %336 = vmatprep.subr.bf16.mxu0 0
    %337 = vmatpush1.bf16.msra.mxu0 0
    %338 = vmatprep.subr.bf16.mxu0 0
    %339 = vmatpush1.bf16.msra.mxu0 0
    %340 = vmatprep.subr.bf16.mxu0 0
    %341 = vmatpush1.bf16.msra.mxu0 0
    %342 = vmatprep.subr.bf16.mxu0 0
    %343 = vmatpush1.bf16.msra.mxu0 0
    %344 = vmatprep.subr.bf16.mxu0 0
    %345 = vmatpush1.bf16.msra.mxu0 0
    %346 = vmatprep.mubr.bf16.mxu0 0
    %347 = vmatmul.mubr.bf16.gmra.mrb[0].mxu0 %v58
    %v348 = vpop.f32.mrb[0].mxu0
    %v349 = vadd.f32 %v104, %v348
    %v350 = vpop.f32.mrb[0].mxu0
    %v351 = vadd.f32 %v108, %v350
    %v352 = vpop.f32.mrb[0].mxu0
    %v353 = vpop.f32.mrb[0].mxu0
    %354 = vdwg.mxu0
    %v355 = vmax.f32 %v308, 0.0
    %v356 = vmax.f32 %v310, 0.0
    %v357 = vmax.f32 %v349, 0.0
    %v358 = vmax.f32 %v351, 0.0
    %v359 = vpack.c.bf16 %v355, %v355
    %v360 = vpack.c.bf16 %v356, %v356
    %v361 = vpack.c.bf16 %v357, %v357
    %v362 = vpack.c.bf16 %v358, %v358
    %v363 = vld [vmem:[#allocation5] sm:$0xff]
    %v364 = vld [vmem:[#allocation5 + $0x8] sm:$0xf]
    %v365 = vld [vmem:[#allocation5 + $0xc] sm:$0xff]
    %v366 = vld [vmem:[#allocation5 + $0x14] sm:$0xf]
    %v367 = vld [vmem:[#allocation5 + $0x18] sm:$0xff]
    %v368 = vld [vmem:[#allocation5 + $0x20] sm:$0xf]
    %v369 = vld [vmem:[#allocation5 + $0x24] sm:$0xff]
    %v370 = vld [vmem:[#allocation5 + $0x2c] sm:$0xf]
    %v371 = vld [vmem:[#allocation5 + $0x30] sm:$0xff]
    %v372 = vld [vmem:[#allocation5 + $0x38] sm:$0xf]
    %v373 = vld [vmem:[#allocation5 + $0x3c] sm:$0xff]
    %v374 = vld [vmem:[#allocation5 + $0x44] sm:$0xf]
    %v375 = vld [vmem:[#allocation5 + $0x48] sm:$0xff]
    %v376 = vld [vmem:[#allocation5 + $0x50] sm:$0xf]
    %v377 = vld [vmem:[#allocation5 + $0x54] sm:$0xff]
    %v378 = vld [vmem:[#allocation5 + $0x5c] sm:$0xf]
    %v379 = vld [vmem:[#allocation5 + $0x60] sm:$0xff]
    %v380 = vld [vmem:[#allocation5 + $0x68] sm:$0xf]
    %v381 = vld [vmem:[#allocation5 + $0x6c] sm:$0xff]
    %v382 = vld [vmem:[#allocation5 + $0x74] sm:$0xf]
    %v383 = vld [vmem:[#allocation5 + $0x78] sm:$0xff]
    %v384 = vld [vmem:[#allocation5 + $0x80] sm:$0xf]
    %v385 = vld [vmem:[#allocation5 + $0x84] sm:$0xff]
    %v386 = vld [vmem:[#allocation5 + $0x8c] sm:$0xf]
    %v387 = vld [vmem:[#allocation5 + $0x90] sm:$0xff]
    %v388 = vld [vmem:[#allocation5 + $0x98] sm:$0xf]
    %v389 = vld [vmem:[#allocation5 + $0x9c] sm:$0xff]
    %v390 = vld [vmem:[#allocation5 + $0xa4] sm:$0xf]
    %v391 = vld [vmem:[#allocation5 + $0xa8] sm:$0xff]
    %v392 = vld [vmem:[#allocation5 + $0xb0] sm:$0xf]
    %v393 = vld [vmem:[#allocation5 + $0xb4] sm:$0xff]
    %v394 = vld [vmem:[#allocation5 + $0xbc] sm:$0xf]
    %v395 = vld [vmem:[#allocation5 + $0xc0] sm:$0xff]
    %v396 = vld [vmem:[#allocation5 + $0xc8] sm:$0xf]
    %v397 = vld [vmem:[#allocation5 + $0xcc] sm:$0xff]
    %v398 = vld [vmem:[#allocation5 + $0xd4] sm:$0xf]
    %v399 = vld [vmem:[#allocation5 + $0xd8] sm:$0xff]
    %v400 = vld [vmem:[#allocation5 + $0xe0] sm:$0xf]
    %v401 = vld [vmem:[#allocation5 + $0xe4] sm:$0xff]
    %v402 = vld [vmem:[#allocation5 + $0xec] sm:$0xf]
    %v403 = vld [vmem:[#allocation5 + $0xf0] sm:$0xff]
    %v404 = vld [vmem:[#allocation5 + $0xf8] sm:$0xf]
    %v405 = vld [vmem:[#allocation5 + $0xfc] sm:$0xff]
    %v406 = vld [vmem:[#allocation5 + $0x104] sm:$0xf]
    %v407 = vld [vmem:[#allocation5 + $0x108] sm:$0xff]
    %v408 = vld [vmem:[#allocation5 + $0x110] sm:$0xf]
    %v409 = vld [vmem:[#allocation5 + $0x114] sm:$0xff]
    %v410 = vld [vmem:[#allocation5 + $0x11c] sm:$0xf]
    %v411 = vld [vmem:[#allocation5 + $0x120] sm:$0xff]
    %v412 = vld [vmem:[#allocation5 + $0x128] sm:$0xf]
    %v413 = vld [vmem:[#allocation5 + $0x12c] sm:$0xff]
    %v414 = vld [vmem:[#allocation5 + $0x134] sm:$0xf]
    %v415 = vld [vmem:[#allocation5 + $0x138] sm:$0xff]
    %v416 = vld [vmem:[#allocation5 + $0x140] sm:$0xf]
    %v417 = vld [vmem:[#allocation5 + $0x144] sm:$0xff]
    %v418 = vld [vmem:[#allocation5 + $0x14c] sm:$0xf]
    %v419 = vld [vmem:[#allocation5 + $0x150] sm:$0xff]
    %v420 = vld [vmem:[#allocation5 + $0x158] sm:$0xf]
    %v421 = vld [vmem:[#allocation5 + $0x15c] sm:$0xff]
    %v422 = vld [vmem:[#allocation5 + $0x164] sm:$0xf]
    %v423 = vld [vmem:[#allocation5 + $0x168] sm:$0xff]
    %v424 = vld [vmem:[#allocation5 + $0x170] sm:$0xf]
    %v425 = vld [vmem:[#allocation5 + $0x174] sm:$0xff]
    %v426 = vld [vmem:[#allocation5 + $0x17c] sm:$0xf]
    %v427 = vld [vmem:[#allocation5 + $0x180] sm:$0xff]
    %v428 = vld [vmem:[#allocation5 + $0x188] sm:$0xf]
    %v429 = vld [vmem:[#allocation5 + $0x18c] sm:$0xff]
    %v430 = vld [vmem:[#allocation5 + $0x194] sm:$0xf]
    %v431 = vld [vmem:[#allocation5 + $0x198] sm:$0xff]
    %v432 = vld [vmem:[#allocation5 + $0x1a0] sm:$0xf]
    %v433 = vld [vmem:[#allocation5 + $0x1a4] sm:$0xff]
    %v434 = vld [vmem:[#allocation5 + $0x1ac] sm:$0xf]
    %v435 = vld [vmem:[#allocation5 + $0x1b0] sm:$0xff]
    %v436 = vld [vmem:[#allocation5 + $0x1b8] sm:$0xf]
    %v437 = vld [vmem:[#allocation5 + $0x1bc] sm:$0xff]
    %v438 = vld [vmem:[#allocation5 + $0x1c4] sm:$0xf]
    %v439 = vld [vmem:[#allocation5 + $0x1c8] sm:$0xff]
    %v440 = vld [vmem:[#allocation5 + $0x1d0] sm:$0xf]
    %v441 = vld [vmem:[#allocation5 + $0x1d4] sm:$0xff]
    %v442 = vld [vmem:[#allocation5 + $0x1dc] sm:$0xf]
    %v443 = vld [vmem:[#allocation5 + $0x1e0] sm:$0xff]
    %v444 = vld [vmem:[#allocation5 + $0x1e8] sm:$0xf]
    %v445 = vld [vmem:[#allocation5 + $0x1ec] sm:$0xff]
    %v446 = vld [vmem:[#allocation5 + $0x1f4] sm:$0xf]
    %v447 = vld [vmem:[#allocation5 + $0x1f8] sm:$0xff]
    %v448 = vld [vmem:[#allocation5 + $0x200] sm:$0xf]
    %v449 = vld [vmem:[#allocation5 + $0x204] sm:$0xff]
    %v450 = vld [vmem:[#allocation5 + $0x20c] sm:$0xf]
    %v451 = vld [vmem:[#allocation5 + $0x210] sm:$0xff]
    %v452 = vld [vmem:[#allocation5 + $0x218] sm:$0xf]
    %v453 = vld [vmem:[#allocation5 + $0x21c] sm:$0xff]
    %v454 = vld [vmem:[#allocation5 + $0x224] sm:$0xf]
    %v455 = vld [vmem:[#allocation5 + $0x228] sm:$0xff]
    %v456 = vld [vmem:[#allocation5 + $0x230] sm:$0xf]
    %v457 = vld [vmem:[#allocation5 + $0x234] sm:$0xff]
    %v458 = vld [vmem:[#allocation5 + $0x23c] sm:$0xf]
    %v459 = vld [vmem:[#allocation5 + $0x240] sm:$0xff]
    %v460 = vld [vmem:[#allocation5 + $0x248] sm:$0xf]
    %v461 = vld [vmem:[#allocation5 + $0x24c] sm:$0xff]
    %v462 = vld [vmem:[#allocation5 + $0x254] sm:$0xf]
    %v463 = vld [vmem:[#allocation5 + $0x258] sm:$0xff]
    %v464 = vld [vmem:[#allocation5 + $0x260] sm:$0xf]
    %v465 = vld [vmem:[#allocation5 + $0x264] sm:$0xff]
    %v466 = vld [vmem:[#allocation5 + $0x26c] sm:$0xf]
    %v467 = vld [vmem:[#allocation5 + $0x270] sm:$0xff]
    %v468 = vld [vmem:[#allocation5 + $0x278] sm:$0xf]
    %v469 = vld [vmem:[#allocation5 + $0x27c] sm:$0xff]
    %v470 = vld [vmem:[#allocation5 + $0x284] sm:$0xf]
    %v471 = vld [vmem:[#allocation5 + $0x288] sm:$0xff]
    %v472 = vld [vmem:[#allocation5 + $0x290] sm:$0xf]
    %v473 = vld [vmem:[#allocation5 + $0x294] sm:$0xff]
    %v474 = vld [vmem:[#allocation5 + $0x29c] sm:$0xf]
    %v475 = vld [vmem:[#allocation5 + $0x2a0] sm:$0xff]
    %v476 = vld [vmem:[#allocation5 + $0x2a8] sm:$0xf]
    %v477 = vld [vmem:[#allocation5 + $0x2ac] sm:$0xff]
    %v478 = vld [vmem:[#allocation5 + $0x2b4] sm:$0xf]
    %v479 = vld [vmem:[#allocation5 + $0x2b8] sm:$0xff]
    %v480 = vld [vmem:[#allocation5 + $0x2c0] sm:$0xf]
    %v481 = vld [vmem:[#allocation5 + $0x2c4] sm:$0xff]
    %v482 = vld [vmem:[#allocation5 + $0x2cc] sm:$0xf]
    %v483 = vld [vmem:[#allocation5 + $0x2d0] sm:$0xff]
    %v484 = vld [vmem:[#allocation5 + $0x2d8] sm:$0xf]
    %v485 = vld [vmem:[#allocation5 + $0x2dc] sm:$0xff]
    %v486 = vld [vmem:[#allocation5 + $0x2e4] sm:$0xf]
    %v487 = vld [vmem:[#allocation5 + $0x2e8] sm:$0xff]
    %v488 = vld [vmem:[#allocation5 + $0x2f0] sm:$0xf]
    %v489 = vld [vmem:[#allocation5 + $0x2f4] sm:$0xff]
    %v490 = vld [vmem:[#allocation5 + $0x2fc] sm:$0xf]
    %v491 = vld [vmem:[%s4] sm:$0x7]
    %v493 = vlaneseq
    %v494 = vshrl.u32 %v493, 7
    %v495 = vsub.s32 0, %v494
    %v496 = vrot.slane %v491, %v495
    %v497 = vlaneseq
    %v498 = vshrl.u32 %v497, 7
    %v499 = vsub.s32 1, %v498
    %v500 = vrot.slane %v491, %v499
    %v501 = vlaneseq
    %v502 = vshrl.u32 %v501, 7
    %v503 = vsub.s32 2, %v502
    %v504 = vrot.slane %v491, %v503
    %v636 = vunpack.c.l.b16 %v363
    %v637 = vunpack.c.h.b16 %v363
    %v638 = vunpack.c.l.b16 %v364
    %v639 = vunpack.c.l.b16 %v365
    %v640 = vunpack.c.h.b16 %v365
    %v641 = vunpack.c.l.b16 %v366
    %v642 = vunpack.c.l.b16 %v367
    %v643 = vunpack.c.h.b16 %v367
    %v644 = vunpack.c.l.b16 %v368
    %v645 = vunpack.c.l.b16 %v369
    %v646 = vunpack.c.h.b16 %v369
    %v647 = vunpack.c.l.b16 %v370
    %v648 = vunpack.c.l.b16 %v371
    %v649 = vunpack.c.h.b16 %v371
    %v650 = vunpack.c.l.b16 %v372
    %v651 = vunpack.c.l.b16 %v373
    %v652 = vunpack.c.h.b16 %v373
    %v653 = vunpack.c.l.b16 %v374
    %v654 = vunpack.c.l.b16 %v375
    %v655 = vunpack.c.h.b16 %v375
    %v656 = vunpack.c.l.b16 %v376
    %v657 = vunpack.c.l.b16 %v377
    %v658 = vunpack.c.h.b16 %v377
    %v659 = vunpack.c.l.b16 %v378
    %v660 = vunpack.c.l.b16 %v379
    %v661 = vunpack.c.h.b16 %v379
    %v662 = vunpack.c.l.b16 %v380
    %v663 = vunpack.c.l.b16 %v381
    %v664 = vunpack.c.h.b16 %v381
    %v665 = vunpack.c.l.b16 %v382
    %v666 = vunpack.c.l.b16 %v383
    %v667 = vunpack.c.h.b16 %v383
    %v668 = vunpack.c.l.b16 %v384
    %v669 = vunpack.c.l.b16 %v385
    %v670 = vunpack.c.h.b16 %v385
    %v671 = vunpack.c.l.b16 %v386
    %v672 = vunpack.c.l.b16 %v387
    %v673 = vunpack.c.h.b16 %v387
    %v674 = vunpack.c.l.b16 %v388
    %v675 = vunpack.c.l.b16 %v389
    %v676 = vunpack.c.h.b16 %v389
    %v677 = vunpack.c.l.b16 %v390
    %v678 = vunpack.c.l.b16 %v391
    %v679 = vunpack.c.h.b16 %v391
    %v680 = vunpack.c.l.b16 %v392
    %v681 = vunpack.c.l.b16 %v393
    %v682 = vunpack.c.h.b16 %v393
    %v683 = vunpack.c.l.b16 %v394
    %v684 = vunpack.c.l.b16 %v395
    %v685 = vunpack.c.h.b16 %v395
    %v686 = vunpack.c.l.b16 %v396
    %v687 = vunpack.c.l.b16 %v397
    %v688 = vunpack.c.h.b16 %v397
    %v689 = vunpack.c.l.b16 %v398
    %v690 = vunpack.c.l.b16 %v399
    %v691 = vunpack.c.h.b16 %v399
    %v692 = vunpack.c.l.b16 %v400
    %v693 = vunpack.c.l.b16 %v401
    %v694 = vunpack.c.h.b16 %v401
    %v695 = vunpack.c.l.b16 %v402
    %v696 = vunpack.c.l.b16 %v403
    %v697 = vunpack.c.h.b16 %v403
    %v698 = vunpack.c.l.b16 %v404
    %v699 = vunpack.c.l.b16 %v405
    %v700 = vunpack.c.h.b16 %v405
    %v701 = vunpack.c.l.b16 %v406
    %v702 = vunpack.c.l.b16 %v407
    %v703 = vunpack.c.h.b16 %v407
    %v704 = vunpack.c.l.b16 %v408
    %v705 = vunpack.c.l.b16 %v409
    %v706 = vunpack.c.h.b16 %v409
    %v707 = vunpack.c.l.b16 %v410
    %v708 = vunpack.c.l.b16 %v411
    %v709 = vunpack.c.h.b16 %v411
    %v710 = vunpack.c.l.b16 %v412
    %v711 = vunpack.c.l.b16 %v413
    %v712 = vunpack.c.h.b16 %v413
    %v713 = vunpack.c.l.b16 %v414
    %v714 = vunpack.c.l.b16 %v415
    %v715 = vunpack.c.h.b16 %v415
    %v716 = vunpack.c.l.b16 %v416
    %v717 = vunpack.c.l.b16 %v417
    %v718 = vunpack.c.h.b16 %v417
    %v719 = vunpack.c.l.b16 %v418
    %v720 = vunpack.c.l.b16 %v419
    %v721 = vunpack.c.h.b16 %v419
    %v722 = vunpack.c.l.b16 %v420
    %v723 = vunpack.c.l.b16 %v421
    %v724 = vunpack.c.h.b16 %v421
    %v725 = vunpack.c.l.b16 %v422
    %v726 = vunpack.c.l.b16 %v423
    %v727 = vunpack.c.h.b16 %v423
    %v728 = vunpack.c.l.b16 %v424
    %v729 = vunpack.c.l.b16 %v425
    %v730 = vunpack.c.h.b16 %v425
    %v731 = vunpack.c.l.b16 %v426
    %v732 = vunpack.c.l.b16 %v427
    %v733 = vunpack.c.h.b16 %v427
    %v734 = vunpack.c.l.b16 %v428
    %v735 = vunpack.c.l.b16 %v429
    %v736 = vunpack.c.h.b16 %v429
    %v737 = vunpack.c.l.b16 %v430
    %v738 = vunpack.c.l.b16 %v431
    %v739 = vunpack.c.h.b16 %v431
    %v740 = vunpack.c.l.b16 %v432
    %v741 = vunpack.c.l.b16 %v433
    %v742 = vunpack.c.h.b16 %v433
    %v743 = vunpack.c.l.b16 %v434
    %v744 = vunpack.c.l.b16 %v435
    %v745 = vunpack.c.h.b16 %v435
    %v746 = vunpack.c.l.b16 %v436
    %v747 = vunpack.c.l.b16 %v437
    %v748 = vunpack.c.h.b16 %v437
    %v749 = vunpack.c.l.b16 %v438
    %v750 = vunpack.c.l.b16 %v439
    %v751 = vunpack.c.h.b16 %v439
    %v752 = vunpack.c.l.b16 %v440
    %v753 = vunpack.c.l.b16 %v441
    %v754 = vunpack.c.h.b16 %v441
    %v755 = vunpack.c.l.b16 %v442
    %v756 = vunpack.c.l.b16 %v443
    %v757 = vunpack.c.h.b16 %v443
    %v758 = vunpack.c.l.b16 %v444
    %v759 = vunpack.c.l.b16 %v445
    %v760 = vunpack.c.h.b16 %v445
    %v761 = vunpack.c.l.b16 %v446
    %v762 = vunpack.c.l.b16 %v447
    %v763 = vunpack.c.h.b16 %v447
    %v764 = vunpack.c.l.b16 %v448
    %v765 = vunpack.c.l.b16 %v449
    %v766 = vunpack.c.h.b16 %v449
    %v767 = vunpack.c.l.b16 %v450
    %v768 = vunpack.c.l.b16 %v451
    %v769 = vunpack.c.h.b16 %v451
    %v770 = vunpack.c.l.b16 %v452
    %v771 = vunpack.c.l.b16 %v453
    %v772 = vunpack.c.h.b16 %v453
    %v773 = vunpack.c.l.b16 %v454
    %v774 = vunpack.c.l.b16 %v455
    %v775 = vunpack.c.h.b16 %v455
    %v776 = vunpack.c.l.b16 %v456
    %v777 = vunpack.c.l.b16 %v457
    %v778 = vunpack.c.h.b16 %v457
    %v779 = vunpack.c.l.b16 %v458
    %v780 = vunpack.c.l.b16 %v459
    %v781 = vunpack.c.h.b16 %v459
    %v782 = vunpack.c.l.b16 %v460
    %v783 = vunpack.c.l.b16 %v461
    %v784 = vunpack.c.h.b16 %v461
    %v785 = vunpack.c.l.b16 %v462
    %v786 = vunpack.c.l.b16 %v463
    %v787 = vunpack.c.h.b16 %v463
    %v788 = vunpack.c.l.b16 %v464
    %v789 = vunpack.c.l.b16 %v465
    %v790 = vunpack.c.h.b16 %v465
    %v791 = vunpack.c.l.b16 %v466
    %v792 = vunpack.c.l.b16 %v467
    %v793 = vunpack.c.h.b16 %v467
    %v794 = vunpack.c.l.b16 %v468
    %v795 = vunpack.c.l.b16 %v469
    %v796 = vunpack.c.h.b16 %v469
    %v797 = vunpack.c.l.b16 %v470
    %v798 = vunpack.c.l.b16 %v471
    %v799 = vunpack.c.h.b16 %v471
    %v800 = vunpack.c.l.b16 %v472
    %v801 = vunpack.c.l.b16 %v473
    %v802 = vunpack.c.h.b16 %v473
    %v803 = vunpack.c.l.b16 %v474
    %v804 = vunpack.c.l.b16 %v475
    %v805 = vunpack.c.h.b16 %v475
    %v806 = vunpack.c.l.b16 %v476
    %v807 = vunpack.c.l.b16 %v477
    %v808 = vunpack.c.h.b16 %v477
    %v809 = vunpack.c.l.b16 %v478
    %v810 = vunpack.c.l.b16 %v479
    %v811 = vunpack.c.h.b16 %v479
    %v812 = vunpack.c.l.b16 %v480
    %v813 = vunpack.c.l.b16 %v481
    %v814 = vunpack.c.h.b16 %v481
    %v815 = vunpack.c.l.b16 %v482
    %v816 = vunpack.c.l.b16 %v483
    %v817 = vunpack.c.h.b16 %v483
    %v818 = vunpack.c.l.b16 %v484
    %v819 = vunpack.c.l.b16 %v485
    %v820 = vunpack.c.h.b16 %v485
    %v821 = vunpack.c.l.b16 %v486
    %v822 = vunpack.c.l.b16 %v487
    %v823 = vunpack.c.h.b16 %v487
    %v824 = vunpack.c.l.b16 %v488
    %v825 = vunpack.c.l.b16 %v489
    %v826 = vunpack.c.h.b16 %v489
    %v827 = vunpack.c.l.b16 %v490
    %v828 = vpack.c.b16 %v639, %v636
    %v829 = vpack.c.b16 %v640, %v637
    %v830 = vpack.c.b16 %v641, %v638
    %v831 = vpack.c.b16 %v645, %v642
    %v832 = vpack.c.b16 %v646, %v643
    %v833 = vpack.c.b16 %v647, %v644
    %v834 = vpack.c.b16 %v651, %v648
    %v835 = vpack.c.b16 %v652, %v649
    %v836 = vpack.c.b16 %v653, %v650
    %v837 = vpack.c.b16 %v657, %v654
    %v838 = vpack.c.b16 %v658, %v655
    %v839 = vpack.c.b16 %v659, %v656
    %v840 = vpack.c.b16 %v663, %v660
    %v841 = vpack.c.b16 %v664, %v661
    %v842 = vpack.c.b16 %v665, %v662
    %v843 = vpack.c.b16 %v669, %v666
    %v844 = vpack.c.b16 %v670, %v667
    %v845 = vpack.c.b16 %v671, %v668
    %v846 = vpack.c.b16 %v675, %v672
    %v847 = vpack.c.b16 %v676, %v673
    %v848 = vpack.c.b16 %v677, %v674
    %v849 = vpack.c.b16 %v681, %v678
    %v850 = vpack.c.b16 %v682, %v679
    %v851 = vpack.c.b16 %v683, %v680
    %v852 = vpack.c.b16 %v687, %v684
    %v853 = vpack.c.b16 %v688, %v685
    %v854 = vpack.c.b16 %v689, %v686
    %v855 = vpack.c.b16 %v693, %v690
    %v856 = vpack.c.b16 %v694, %v691
    %v857 = vpack.c.b16 %v695, %v692
    %v858 = vpack.c.b16 %v699, %v696
    %v859 = vpack.c.b16 %v700, %v697
    %v860 = vpack.c.b16 %v701, %v698
    %v861 = vpack.c.b16 %v705, %v702
    %v862 = vpack.c.b16 %v706, %v703
    %v863 = vpack.c.b16 %v707, %v704
    %v864 = vpack.c.b16 %v711, %v708
    %v865 = vpack.c.b16 %v712, %v709
    %v866 = vpack.c.b16 %v713, %v710
    %v867 = vpack.c.b16 %v717, %v714
    %v868 = vpack.c.b16 %v718, %v715
    %v869 = vpack.c.b16 %v719, %v716
    %v870 = vpack.c.b16 %v723, %v720
    %v871 = vpack.c.b16 %v724, %v721
    %v872 = vpack.c.b16 %v725, %v722
    %v873 = vpack.c.b16 %v729, %v726
    %v874 = vpack.c.b16 %v730, %v727
    %v875 = vpack.c.b16 %v731, %v728
    %v876 = vpack.c.b16 %v735, %v732
    %v877 = vpack.c.b16 %v736, %v733
    %v878 = vpack.c.b16 %v737, %v734
    %v879 = vpack.c.b16 %v741, %v738
    %v880 = vpack.c.b16 %v742, %v739
    %v881 = vpack.c.b16 %v743, %v740
    %v882 = vpack.c.b16 %v747, %v744
    %v883 = vpack.c.b16 %v748, %v745
    %v884 = vpack.c.b16 %v749, %v746
    %v885 = vpack.c.b16 %v753, %v750
    %v886 = vpack.c.b16 %v754, %v751
    %v887 = vpack.c.b16 %v755, %v752
    %v888 = vpack.c.b16 %v759, %v756
    %v889 = vpack.c.b16 %v760, %v757
    %v890 = vpack.c.b16 %v761, %v758
    %v891 = vpack.c.b16 %v765, %v762
    %v892 = vpack.c.b16 %v766, %v763
    %v893 = vpack.c.b16 %v767, %v764
    %v894 = vpack.c.b16 %v771, %v768
    %v895 = vpack.c.b16 %v772, %v769
    %v896 = vpack.c.b16 %v773, %v770
    %v897 = vpack.c.b16 %v777, %v774
    %v898 = vpack.c.b16 %v778, %v775
    %v899 = vpack.c.b16 %v779, %v776
    %v900 = vpack.c.b16 %v783, %v780
    %v901 = vpack.c.b16 %v784, %v781
    %v902 = vpack.c.b16 %v785, %v782
    %v903 = vpack.c.b16 %v789, %v786
    %v904 = vpack.c.b16 %v790, %v787
    %v905 = vpack.c.b16 %v791, %v788
    %v906 = vpack.c.b16 %v795, %v792
    %v907 = vpack.c.b16 %v796, %v793
    %v908 = vpack.c.b16 %v797, %v794
    %v909 = vpack.c.b16 %v801, %v798
    %v910 = vpack.c.b16 %v802, %v799
    %v911 = vpack.c.b16 %v803, %v800
    %v912 = vpack.c.b16 %v807, %v804
    %v913 = vpack.c.b16 %v808, %v805
    %v914 = vpack.c.b16 %v809, %v806
    %v915 = vpack.c.b16 %v813, %v810
    %v916 = vpack.c.b16 %v814, %v811
    %v917 = vpack.c.b16 %v815, %v812
    %v918 = vpack.c.b16 %v819, %v816
    %v919 = vpack.c.b16 %v820, %v817
    %v920 = vpack.c.b16 %v821, %v818
    %v921 = vpack.c.b16 %v825, %v822
    %v922 = vpack.c.b16 %v826, %v823
    %v923 = vpack.c.b16 %v827, %v824
    %1020 = vmatprep.subr.bf16.mxu0 %v829
    %1021 = vmatpush1.bf16.msra.mxu0 %v828
    %1022 = vmatprep.subr.bf16.mxu0 %v832
    %1023 = vmatpush1.bf16.msra.mxu0 %v831
    %1024 = vmatprep.subr.bf16.mxu0 %v835
    %1025 = vmatpush1.bf16.msra.mxu0 %v834
    %1026 = vmatprep.subr.bf16.mxu0 %v838
    %1027 = vmatpush1.bf16.msra.mxu0 %v837
    %1028 = vmatprep.subr.bf16.mxu0 %v841
    %1029 = vmatpush1.bf16.msra.mxu0 %v840
    %1030 = vmatprep.subr.bf16.mxu0 %v844
    %1031 = vmatpush1.bf16.msra.mxu0 %v843
    %1032 = vmatprep.subr.bf16.mxu0 %v847
    %1033 = vmatpush1.bf16.msra.mxu0 %v846
    %1034 = vmatprep.subr.bf16.mxu0 %v850
    %1035 = vmatpush1.bf16.msra.mxu0 %v849
    %1036 = vmatprep.subr.bf16.mxu0 %v853
    %1037 = vmatpush1.bf16.msra.mxu0 %v852
    %1038 = vmatprep.subr.bf16.mxu0 %v856
    %1039 = vmatpush1.bf16.msra.mxu0 %v855
    %1040 = vmatprep.subr.bf16.mxu0 %v859
    %1041 = vmatpush1.bf16.msra.mxu0 %v858
    %1042 = vmatprep.subr.bf16.mxu0 %v862
    %1043 = vmatpush1.bf16.msra.mxu0 %v861
    %1044 = vmatprep.subr.bf16.mxu0 %v865
    %1045 = vmatpush1.bf16.msra.mxu0 %v864
    %1046 = vmatprep.subr.bf16.mxu0 %v868
    %1047 = vmatpush1.bf16.msra.mxu0 %v867
    %1048 = vmatprep.subr.bf16.mxu0 %v871
    %1049 = vmatpush1.bf16.msra.mxu0 %v870
    %1050 = vmatprep.subr.bf16.mxu0 %v874
    %1051 = vmatpush1.bf16.msra.mxu0 %v873
    %1052 = vmatprep.mubr.bf16.mxu0 %v360
    %1053 = vmatmul.mubr.bf16.gmra.mrb[0].mxu0 %v359
    %v1054 = vpop.f32.mrb[0].mxu0
    %v1055 = vadd.f32 %v496, %v1054
    %v1056 = vpop.f32.mrb[0].mxu0
    %v1057 = vadd.f32 %v500, %v1056
    %v1058 = vpop.f32.mrb[0].mxu0
    %v1059 = vpop.f32.mrb[0].mxu0
    %1060 = vdwg.mxu0
    %1061 = vmatprep.subr.bf16.mxu0 %v877
    %1062 = vmatpush1.bf16.msra.mxu0 %v876
    %1063 = vmatprep.subr.bf16.mxu0 %v880
    %1064 = vmatpush1.bf16.msra.mxu0 %v879
    %1065 = vmatprep.subr.bf16.mxu0 %v883
    %1066 = vmatpush1.bf16.msra.mxu0 %v882
    %1067 = vmatprep.subr.bf16.mxu0 %v886
    %1068 = vmatpush1.bf16.msra.mxu0 %v885
    %1069 = vmatprep.subr.bf16.mxu0 %v889
    %1070 = vmatpush1.bf16.msra.mxu0 %v888
    %1071 = vmatprep.subr.bf16.mxu0 %v892
    %1072 = vmatpush1.bf16.msra.mxu0 %v891
    %1073 = vmatprep.subr.bf16.mxu0 %v895
    %1074 = vmatpush1.bf16.msra.mxu0 %v894
    %1075 = vmatprep.subr.bf16.mxu0 %v898
    %1076 = vmatpush1.bf16.msra.mxu0 %v897
    %1077 = vmatprep.subr.bf16.mxu0 %v901
    %1078 = vmatpush1.bf16.msra.mxu0 %v900
    %1079 = vmatprep.subr.bf16.mxu0 %v904
    %1080 = vmatpush1.bf16.msra.mxu0 %v903
    %1081 = vmatprep.subr.bf16.mxu0 %v907
    %1082 = vmatpush1.bf16.msra.mxu0 %v906
    %1083 = vmatprep.subr.bf16.mxu0 %v910
    %1084 = vmatpush1.bf16.msra.mxu0 %v909
    %1085 = vmatprep.subr.bf16.mxu0 %v913
    %1086 = vmatpush1.bf16.msra.mxu0 %v912
    %1087 = vmatprep.subr.bf16.mxu0 %v916
    %1088 = vmatpush1.bf16.msra.mxu0 %v915
    %1089 = vmatprep.subr.bf16.mxu0 %v919
    %1090 = vmatpush1.bf16.msra.mxu0 %v918
    %1091 = vmatprep.subr.bf16.mxu0 %v922
    %1092 = vmatpush1.bf16.msra.mxu0 %v921
    %1093 = vmatprep.mubr.bf16.mxu0 %v362
    %1094 = vmatmul.mubr.bf16.gmra.mrb[0].mxu0 %v361
    %v1095 = vpop.f32.mrb[0].mxu0
    %v1096 = vadd.f32 %v1055, %v1095
    %v1097 = vpop.f32.mrb[0].mxu0
    %v1098 = vadd.f32 %v1057, %v1097
    %v1099 = vpop.f32.mrb[0].mxu0
    %v1100 = vpop.f32.mrb[0].mxu0
    %1101 = vdwg.mxu0
    %1102 = vmatprep.subr.bf16.mxu0 0
    %1103 = vmatpush1.bf16.msra.mxu0 %v830
    %1104 = vmatprep.subr.bf16.mxu0 0
    %1105 = vmatpush1.bf16.msra.mxu0 %v833
    %1106 = vmatprep.subr.bf16.mxu0 0
    %1107 = vmatpush1.bf16.msra.mxu0 %v836
    %1108 = vmatprep.subr.bf16.mxu0 0
    %1109 = vmatpush1.bf16.msra.mxu0 %v839
    %1110 = vmatprep.subr.bf16.mxu0 0
    %1111 = vmatpush1.bf16.msra.mxu0 %v842
    %1112 = vmatprep.subr.bf16.mxu0 0
    %1113 = vmatpush1.bf16.msra.mxu0 %v845
    %1114 = vmatprep.subr.bf16.mxu0 0
    %1115 = vmatpush1.bf16.msra.mxu0 %v848
    %1116 = vmatprep.subr.bf16.mxu0 0
    %1117 = vmatpush1.bf16.msra.mxu0 %v851
    %1118 = vmatprep.subr.bf16.mxu0 0
    %1119 = vmatpush1.bf16.msra.mxu0 %v854
    %1120 = vmatprep.subr.bf16.mxu0 0
    %1121 = vmatpush1.bf16.msra.mxu0 %v857
    %1122 = vmatprep.subr.bf16.mxu0 0
    %1123 = vmatpush1.bf16.msra.mxu0 %v860
    %1124 = vmatprep.subr.bf16.mxu0 0
    %1125 = vmatpush1.bf16.msra.mxu0 %v863
    %1126 = vmatprep.subr.bf16.mxu0 0
    %1127 = vmatpush1.bf16.msra.mxu0 %v866
    %1128 = vmatprep.subr.bf16.mxu0 0
    %1129 = vmatpush1.bf16.msra.mxu0 %v869
    %1130 = vmatprep.subr.bf16.mxu0 0
    %1131 = vmatpush1.bf16.msra.mxu0 %v872
    %1132 = vmatprep.subr.bf16.mxu0 0
    %1133 = vmatpush1.bf16.msra.mxu0 %v875
    %1134 = vmatprep.mubr.bf16.mxu0 %v360
    %1135 = vmatmul.mubr.bf16.gmra.mrb[0].mxu0 %v359
    %v1136 = vpop.f32.mrb[0].mxu0
    %v1137 = vadd.f32 %v504, %v1136
    %v1138 = vpop.f32.mrb[0].mxu0
    %v1139 = vpop.f32.mrb[0].mxu0
    %v1140 = vpop.f32.mrb[0].mxu0
    %1141 = vdwg.mxu0
    %1142 = vmatprep.subr.bf16.mxu0 0
    %1143 = vmatpush1.bf16.msra.mxu0 %v878
    %1144 = vmatprep.subr.bf16.mxu0 0
    %1145 = vmatpush1.bf16.msra.mxu0 %v881
    %1146 = vmatprep.subr.bf16.mxu0 0
    %1147 = vmatpush1.bf16.msra.mxu0 %v884
    %1148 = vmatprep.subr.bf16.mxu0 0
    %1149 = vmatpush1.bf16.msra.mxu0 %v887
    %1150 = vmatprep.subr.bf16.mxu0 0
    %1151 = vmatpush1.bf16.msra.mxu0 %v890
    %1152 = vmatprep.subr.bf16.mxu0 0
    %1153 = vmatpush1.bf16.msra.mxu0 %v893
    %1154 = vmatprep.subr.bf16.mxu0 0
    %1155 = vmatpush1.bf16.msra.mxu0 %v896
    %1156 = vmatprep.subr.bf16.mxu0 0
    %1157 = vmatpush1.bf16.msra.mxu0 %v899
    %1158 = vmatprep.subr.bf16.mxu0 0
    %1159 = vmatpush1.bf16.msra.mxu0 %v902
    %1160 = vmatprep.subr.bf16.mxu0 0
    %1161 = vmatpush1.bf16.msra.mxu0 %v905
    %1162 = vmatprep.subr.bf16.mxu0 0
    %1163 = vmatpush1.bf16.msra.mxu0 %v908
    %1164 = vmatprep.subr.bf16.mxu0 0
    %1165 = vmatpush1.bf16.msra.mxu0 %v911
    %1166 = vmatprep.subr.bf16.mxu0 0
    %1167 = vmatpush1.bf16.msra.mxu0 %v914
    %1168 = vmatprep.subr.bf16.mxu0 0
    %1169 = vmatpush1.bf16.msra.mxu0 %v917
    %1170 = vmatprep.subr.bf16.mxu0 0
    %1171 = vmatpush1.bf16.msra.mxu0 %v920
    %1172 = vmatprep.subr.bf16.mxu0 0
    %1173 = vmatpush1.bf16.msra.mxu0 %v923
    %1174 = vmatprep.mubr.bf16.mxu0 %v362
    %1175 = vmatmul.mubr.bf16.gmra.mrb[0].mxu0 %v361
    %v1176 = vpop.f32.mrb[0].mxu0
    %v1177 = vadd.f32 %v1137, %v1176
    %v1178 = vpop.f32.mrb[0].mxu0
    %v1179 = vpop.f32.mrb[0].mxu0
    %v1180 = vpop.f32.mrb[0].mxu0
    %1181 = vdwg.mxu0
    %v1182 = vmax.f32 %v1096, 0.0
    %v1183 = vmax.f32 %v1098, 0.0
    %v1184 = vmax.f32 %v1177, 0.0
    %v1185 = vld [vmem:[%s5] sm:$0x7]
    %v1187 = vlaneseq
    %v1188 = vshrl.u32 %v1187, 7
    %v1189 = vsub.s32 0, %v1188
    %v1190 = vrot.slane %v1185, %v1189
    %v1191 = vlaneseq
    %v1192 = vshrl.u32 %v1191, 7
    %v1193 = vsub.s32 1, %v1192
    %v1194 = vrot.slane %v1185, %v1193
    %v1195 = vlaneseq
    %v1196 = vshrl.u32 %v1195, 7
    %v1197 = vsub.s32 2, %v1196
    %v1198 = vrot.slane %v1185, %v1197
    %v1202 = vmul.f32 %v1182, %v1190
    %v1203 = vmul.f32 %v1183, %v1194
    %v1204 = vmul.f32 %v1184, %v1198
    %v1205 = vadd.f32 %v1202, %v1203
    %v1206 = vadd.f32 %v1205, %v1204
    %1207 = vadd.xlane.f32.xlu0 %v1206
    %v1208 = vpop.xlane.xlu0 %1207
    %v1209 = vld [vmem:[#allocation2] sm:$0x1]
    %v1211 = vlaneseq
    %v1212 = vshrl.u32 %v1211, 7
    %v1213 = vsub.s32 0, %v1212
    %v1214 = vrot.slane %v1209, %v1213
    %v1216 = vadd.f32 %v1208, %v1214
    %vm1217 = vcmask 7168
    %1218 = vst.msk [vmem:[%s7] sm:$0xff] %vm1217, %v1216
    // Predicated region
    $region38: #{critic_forward.1} parent=1 // pred_check
      _
    $region39: #{critic_forward.1} parent=1 // pred_check_branch
      %1220 = sbr.rel (0) target = $region41
    $region40: #{critic_forward.1} parent=1 // pred_region
      _
    $region41: #{critic_forward.1} parent=1 // pred_fallthru
      _
    // Predicated region
    $region42: #{critic_forward.1} parent=1 // pred_check
      _
    $region43: #{critic_forward.1} parent=1 // pred_check_branch
      %1222 = sbr.rel (0) target = $region45
    $region44: #{critic_forward.1} parent=1 // pred_region
      _
    $region45: #{critic_forward.1} parent=1 // pred_fallthru
      _
    %1223 = vsyncpa [#allocation4], 1
    %1224 = vsyncpa [#allocation6], 1

</llo_original>
